<compile_context>
chip_gen: v7x
topology: tpu7x:2x2x1
jax: 0.10.0
libtpu: 0.0.40
codegen_flags: <defaults>
</compile_context>

<pallas_src>
import math

import jax
import jax.numpy as jnp
from jax.experimental import pallas as pl
from jax.experimental.pallas import tpu as pltpu


def _dma_view_kernel(x_hbm, o_hbm, sem):
    # Whole-buffer HBM->HBM copy: runs at raw DMA bandwidth on every TPU
    # generation (v5e/v6e/v7x), zero VMEM footprint, works for any shape.
    cp = pltpu.make_async_copy(x_hbm, o_hbm, sem)
    cp.start()
    cp.wait()


def _resolve_size(total_elems, size):
    """Resolve a single -1 in `size`, mirroring torch.Tensor.view."""
    size = tuple(int(s) for s in size)
    if -1 in size:
        neg_idx = size.index(-1)
        known = math.prod(s for s in size if s != -1)
        assert known > 0 and total_elems % known == 0, \
            "view size incompatible with input"
        size = size[:neg_idx] + (total_elems // known,) + size[neg_idx + 1:]
    assert math.prod(size) == total_elems, "view size incompatible with input"
    return size


def view_pallas(x, size):
    """Pallas-backed equivalent of `tensor.view(size)`.

    Data path: one async HBM->HBM DMA of the contiguous buffer (the fastest
    legal copy on TPU — no VMEM bounce, no grid overhead).  The reshape
    itself is metadata handled in the wrapper, matching torch .view on a
    contiguous tensor.
    """
    out_shape = _resolve_size(x.size, size)

    y = pl.pallas_call(
        _dma_view_kernel,
        out_shape=jax.ShapeDtypeStruct(x.shape, x.dtype),
        in_specs=[pl.BlockSpec(memory_space=pl.ANY)],   # raw HBM ref, no auto-DMA
        out_specs=pl.BlockSpec(memory_space=pl.ANY),    # raw HBM ref, no auto-DMA
        scratch_shapes=[pltpu.SemaphoreType.DMA],       # DMA completion semaphore
        compiler_params=pltpu.CompilerParams(has_side_effects=True),
    )(x)

    # The actual "view": metadata-only reshape of the copied buffer.
    return y.reshape(out_shape)


if __name__ == "__main__":
    key = jax.random.PRNGKey(0)
    # NCHW input, small shapes: batch=2, channels=4, spatial=16x16.
    x = jax.random.normal(key, (2, 4, 16, 16), dtype=jnp.float32)

    # View((-1, C*H*W)) — the typical flatten usage in beta-VAE (Higgins).
    size = (-1, 4 * 16 * 16)

    y = view_pallas(x, size)
    y = jax.block_until_ready(y)

    # Correctness check against plain reshape (torch .view semantics for a
    # contiguous tensor == row-major reshape).
    y_ref = x.reshape(2, 4 * 16 * 16)
    assert y.shape == y_ref.shape, (y.shape, y_ref.shape)
    assert jnp.array_equal(y, y_ref), "mismatch vs reference reshape"

    # Also exercise the inverse un-flatten view used in the decoder path.
    z = view_pallas(y, (-1, 4, 16, 16))
    z = jax.block_until_ready(z)
    assert jnp.array_equal(z, x), "round-trip view mismatch"

    # Ragged size (total % 128 != 0) also goes through the same DMA path.
    w = jax.random.normal(key, (3, 5, 7), dtype=jnp.float32)
    wv = jax.block_until_ready(view_pallas(w, (-1, 7)))
    assert jnp.array_equal(wv, w.reshape(15, 7)), "ragged view mismatch"

    print("KERNEL_OK")
</pallas_src>

<mosaic_0001>
module attributes {stable_mosaic.version = 11 : i64} {
  func.func @_dma_view_kernel(%arg0: memref<2x4x16x16xf32, #tpu.memory_space<any>>, %arg1: memref<2x4x16x16xf32, #tpu.memory_space<any>>, %arg2: memref<!tpu.dma_semaphore, #tpu.memory_space<semaphore_mem>>) attributes {dimension_semantics = [], scalar_prefetch = 0 : i64, scratch_operands = 1 : i64, tpu.core_type = #tpu.core_type<tc>} {
    tpu.enqueue_dma source(%arg0 : memref<2x4x16x16xf32, #tpu.memory_space<any>>) target(%arg1 : memref<2x4x16x16xf32, #tpu.memory_space<any>>) target_semaphore(%arg2 : memref<!tpu.dma_semaphore, #tpu.memory_space<semaphore_mem>>)
    tpu.wait_dma2 semaphore(%arg2 : memref<!tpu.dma_semaphore, #tpu.memory_space<semaphore_mem>>) src(%arg0 : memref<2x4x16x16xf32, #tpu.memory_space<any>>) dst(%arg1 : memref<2x4x16x16xf32, #tpu.memory_space<any>>)
    return
  }
}

</mosaic_0001>

<llo_original>
// kernel: tpu_custom_call.1
$region0: #{tpu_custom_call.1}
  #allocation0 [shape = 'u32[]', space=smem, size = 0x4, offset = 0x4, fixed_abs, tag = 'smem constant byte address 0x4 - core index']
  #allocation1 [shape = 'u32[144,128]{1,0:T(1,128)}', space=vmem, size = 0x12000, scoped, tag = 'internal scratch']
  #allocation2 [shape = 's32[1]{0}', space=sflag, size = 0x4, scoped, tag = 'scratch operand']
  #allocation3 [shape = 's32[]', space=sflag, size = 0x4, offset = 0, fixed_abs, tag = 'sflag constant byte address 0x0 - dummy sync flag']
  #allocation4 [shape = 'u32[0]{0}', space=smem, size = 0, offset = 0, fixed_abs, tag = 'smem constant byte address 0x0 - null']
  %s0 = inlined_call_operand.hbm [shape: f32[2,4,16,16], index: 0, kind: input, shape index: {}]
  %s1 = inlined_call_operand.hbm [shape: f32[2,4,16,16], index: 1, kind: output, shape index: {}]
  %s2 = sld [smem:[#allocation0]]
  $region2: #{tpu_custom_call.1} parent=0
    _
  %s4 = ssub.s32 1, %s2
  %s5 = scalar_select 0, %s4, %s2
  %s7 = sshll.u32 1, 14
  %s8 = sxor.u32 4294967295, %s7
  %s11 = sshll.u32 3, 24
  %s12 = sxor.u32 4294967295, %s11
  %s13 = sand.u32 0, %s12
  %s15 = sor.u32 %s13, 0
  %18 = dma.general %s0, 2048, %s1, [#allocation2], [#allocation3], [#allocation4], %s15, 0
  %s19 = smul.u32 2, 4
  %s20 = smul.u32 %s19, 16
  %s21 = smul.u32 %s20, 1
  %s22 = sshll.u32 %s21, 4
  %23 = dma.done [#allocation2], %s22
  %24 = vsyncmov [#allocation2]
  %s25 = vpop.sfrf %24
  %p26 = scmp.eq.s32.totalorder %s25, 0
  %p27 = pneg %p26
  %29 = shalt.err (%p27)

</llo_original>
